<compile_context>
chip_gen: v6e
topology: v6e:2x2x1
jax: 0.10.0
libtpu: 0.0.40
codegen_flags: <defaults>
</compile_context>

<pallas_src>
from functools import partial

import jax
import jax.numpy as jnp
from jax.experimental import pallas as pl
from jax.experimental.pallas import tpu as pltpu


def attention_kernel(x_ref, wqkv_ref, wproj_ref, bproj_ref, o_ref, *,
                     B, N, C, num_heads, head_dim, Cp):
    M = B * N
    # (B, N, C) -> (B*N, C): leading-dim collapse (free).  bf16 operands, f32 accumulation.
    x2 = x_ref[...].reshape(M, C).astype(jnp.bfloat16)

    # Fused QKV projection for all heads at once: (M, C) @ (C, 3*Cp) -> (M, 3*Cp).
    # Column layout (built in the wrapper): [q | k | v], each section Cp(=128)-wide and
    # 128-lane aligned; the softmax scale is already folded into the q columns.
    qkv = jnp.dot(x2, wqkv_ref[...], preferred_element_type=jnp.float32)

    y = jnp.zeros((M, Cp), dtype=jnp.float32)
    for h in range(num_heads):  # static unroll; no concat, single accumulator
        lo, hi = h * head_dim, (h + 1) * head_dim
        q = qkv[:, lo:hi].reshape(B, N, head_dim).astype(jnp.bfloat16)
        k = qkv[:, Cp + lo:Cp + hi].reshape(B, N, head_dim).astype(jnp.bfloat16)
        v = qkv[:, 2 * Cp + lo:2 * Cp + hi].reshape(B, N, head_dim).astype(jnp.bfloat16)

        # Scores, batched over B, contracting head_dim of both sides (no transpose).
        s = jnp.einsum("bnd,bmd->bnm", q, k, preferred_element_type=jnp.float32)

        # Numerically-stable softmax; reciprocal-multiply (EUP) instead of a VALU divide.
        s = s - jnp.max(s, axis=-1, keepdims=True)
        p = jnp.exp(s)
        p = p * pl.reciprocal(jnp.sum(p, axis=-1, keepdims=True), approx=True)

        # (attn @ v) for this head, batched over B: (B, N, head_dim).
        o_h = jnp.einsum("bnm,bmd->bnd", p.astype(jnp.bfloat16), v,
                         preferred_element_type=jnp.float32)

        # Head-merge folded into the output projection:
        #   y += (p_h @ v_h) @ w_proj[h*Dh:(h+1)*Dh, :]
        y = y + jnp.dot(o_h.reshape(M, head_dim).astype(jnp.bfloat16), wproj_ref[h],
                        preferred_element_type=jnp.float32)

    y = y + bproj_ref[...]                                    # (1, Cp) broadcast bias add
    o_ref[...] = y.reshape(B, N, Cp).astype(o_ref.dtype)      # 128-lane dense store


def attention_forward(x, w_qkv, w_proj, b_proj, num_heads):
    """x: (B, N, C); w_qkv: (C, 3C), w_proj: (C, C) stored pre-transposed (y = x @ W);
    b_proj: (1, C)."""
    B, N, C = x.shape
    assert C % num_heads == 0, "dim must be divisible by num_heads"
    head_dim = C // num_heads
    scale = head_dim ** (-0.5)
    Cp = ((C + 127) // 128) * 128          # lane-dense padded channel width
    pad = Cp - C

    # ---- one-time weight transforms (constants; wrapper-side, outside the kernel) ----
    # Fold the softmax scale into the Q columns; pad each q/k/v section to Cp columns so
    # the fused QKV matmul output is 128-lane aligned.
    w_q = w_qkv[:, 0:C] * scale
    w_k = w_qkv[:, C:2 * C]
    w_v = w_qkv[:, 2 * C:3 * C]
    pad_cols = lambda w: jnp.pad(w, ((0, 0), (0, pad)))
    w_qkv_p = jnp.concatenate([pad_cols(w_q), pad_cols(w_k), pad_cols(w_v)],
                              axis=1).astype(jnp.bfloat16)                  # (C, 3*Cp)

    # Output projection split per head (rows of w_proj are ordered (head, head_dim)),
    # output columns zero-padded to Cp.                                      (H, Dh, Cp)
    w_proj_h = jnp.pad(w_proj.reshape(num_heads, head_dim, C),
                       ((0, 0), (0, 0), (0, pad))).astype(jnp.bfloat16)
    b_proj_p = jnp.pad(b_proj.reshape(1, C), ((0, 0), (0, pad))).astype(jnp.float32)

    kernel = partial(attention_kernel, B=B, N=N, C=C, num_heads=num_heads,
                     head_dim=head_dim, Cp=Cp)
    vmem = lambda: pl.BlockSpec(memory_space=pltpu.MemorySpace.VMEM)
    out_p = pl.pallas_call(
        kernel,
        out_shape=jax.ShapeDtypeStruct((B, N, Cp), x.dtype),
        in_specs=[vmem(), vmem(), vmem(), vmem()],
        out_specs=vmem(),
    )(x, w_qkv_p, w_proj_h, b_proj_p)

    return out_p[:, :, :C]                  # drop the lane padding


def reference_forward(x, w_qkv, w_proj, b_proj, num_heads):
    """Pure-JAX reference matching the PyTorch module (eval mode, dropout p=0)."""
    B, N, C = x.shape
    Dh = C // num_heads
    scale = Dh ** (-0.5)
    qkv = x @ w_qkv                                            # (B, N, 3C)
    qkv = qkv.reshape(B, N, 3, num_heads, Dh).transpose(2, 0, 3, 1, 4)
    q, k, v = qkv[0], qkv[1], qkv[2]                           # (B, H, N, Dh)
    attn = jnp.einsum("bhnd,bhmd->bhnm", q, k) * scale
    attn = jax.nn.softmax(attn, axis=-1)
    out = jnp.einsum("bhnm,bhmd->bhnd", attn, v)               # (B, H, N, Dh)
    out = out.transpose(0, 2, 1, 3).reshape(B, N, C)
    return out @ w_proj + b_proj


if __name__ == "__main__":
    B, N, num_heads = 2, 16, 3
    C = 96  # dim; divisible by num_heads -> head_dim = 32

    key = jax.random.PRNGKey(0)
    kx, kq, kp, kb = jax.random.split(key, 4)

    x = jax.random.normal(kx, (B, N, C), dtype=jnp.float32)
    # Deterministic parameter init (nn.Linear-like scale); stored pre-transposed: (in, out).
    w_qkv = jax.random.uniform(kq, (C, 3 * C), dtype=jnp.float32,
                               minval=-1.0, maxval=1.0) / jnp.sqrt(C)
    w_proj = jax.random.uniform(kp, (C, C), dtype=jnp.float32,
                                minval=-1.0, maxval=1.0) / jnp.sqrt(C)
    b_proj = jax.random.uniform(kb, (1, C), dtype=jnp.float32,
                                minval=-1.0, maxval=1.0) / jnp.sqrt(C)

    out = attention_forward(x, w_qkv, w_proj, b_proj, num_heads)
    out = jax.block_until_ready(out)

    ref = reference_forward(x, w_qkv, w_proj, b_proj, num_heads)
    assert out.shape == (B, N, C)
    # bf16 MXU operands + approximate reciprocal -> compare against the f32 reference
    # with a correspondingly relaxed tolerance.
    assert jnp.allclose(out, ref, atol=3e-2, rtol=3e-2), "Pallas output mismatch vs reference"

    print("KERNEL_OK")
</pallas_src>

<mosaic_0001>
module attributes {stable_mosaic.version = 11 : i64} {
  func.func @attention_kernel(%arg0: memref<2x16x96xf32, #tpu.memory_space<vmem>>, %arg1: memref<96x384xbf16, #tpu.memory_space<vmem>>, %arg2: memref<3x32x128xbf16, #tpu.memory_space<vmem>>, %arg3: memref<1x128xf32, #tpu.memory_space<vmem>>, %arg4: memref<2x16x128xf32, #tpu.memory_space<vmem>>) attributes {dimension_semantics = [], scalar_prefetch = 0 : i64, scratch_operands = 0 : i64, tpu.core_type = #tpu.core_type<tc>} {
    %c0 = arith.constant 0 : index
    %c0_0 = arith.constant 0 : index
    %c0_1 = arith.constant 0 : index
    %0 = vector.load %arg0[%c0, %c0_0, %c0_1] : memref<2x16x96xf32, #tpu.memory_space<vmem>>, vector<2x16x96xf32>
    %1 = vector.shape_cast %0 : vector<2x16x96xf32> to vector<32x96xf32>
    %2 = arith.truncf %1 : vector<32x96xf32> to vector<32x96xbf16>
    %c0_2 = arith.constant 0 : index
    %c0_3 = arith.constant 0 : index
    %3 = vector.load %arg1[%c0_2, %c0_3] : memref<96x384xbf16, #tpu.memory_space<vmem>>, vector<96x384xbf16>
    %cst = arith.constant dense<0.000000e+00> : vector<32x384xf32>
    %4 = tpu.matmul %2, %3, %cst {dimension_numbers = #tpu.dot_dimension_numbers<[1], [0], [0], [1], [0, 0, 1, 1], [], []>} : vector<32x96xbf16>, vector<96x384xbf16>, vector<32x384xf32> -> vector<32x384xf32>
    %cst_4 = arith.constant 0.000000e+00 : f32
    %5 = vector.broadcast %cst_4 : f32 to vector<32x128xf32>
    %6 = vector.extract_strided_slice %4 {offsets = [0, 0], sizes = [32, 32], strides = [1, 1]} : vector<32x384xf32> to vector<32x32xf32>
    %7 = vector.shape_cast %6 : vector<32x32xf32> to vector<2x16x32xf32>
    %8 = arith.truncf %7 : vector<2x16x32xf32> to vector<2x16x32xbf16>
    %9 = vector.extract_strided_slice %4 {offsets = [0, 128], sizes = [32, 32], strides = [1, 1]} : vector<32x384xf32> to vector<32x32xf32>
    %10 = vector.shape_cast %9 : vector<32x32xf32> to vector<2x16x32xf32>
    %11 = arith.truncf %10 : vector<2x16x32xf32> to vector<2x16x32xbf16>
    %12 = vector.extract_strided_slice %4 {offsets = [0, 256], sizes = [32, 32], strides = [1, 1]} : vector<32x384xf32> to vector<32x32xf32>
    %13 = vector.shape_cast %12 : vector<32x32xf32> to vector<2x16x32xf32>
    %14 = arith.truncf %13 : vector<2x16x32xf32> to vector<2x16x32xbf16>
    "tpu.trace_start"() <{level = 10 : i32, message = "bnd,bmd->bnm"}> : () -> ()
    %cst_5 = arith.constant dense<0.000000e+00> : vector<2x16x16xf32>
    %15 = tpu.matmul %8, %11, %cst_5 {dimension_numbers = #tpu.dot_dimension_numbers<[2], [2], [1], [1], [0, 0, 0, 1, 1, 1], [0], [0]>} : vector<2x16x32xbf16>, vector<2x16x32xbf16>, vector<2x16x16xf32> -> vector<2x16x16xf32>
    "tpu.trace_stop"() : () -> ()
    %cst_6 = arith.constant dense<0xFF800000> : vector<2x16xf32>
    %16 = vector.multi_reduction <maximumf>, %15, %cst_6 [2] : vector<2x16x16xf32> to vector<2x16xf32>
    %17 = vector.shape_cast %16 : vector<2x16xf32> to vector<2x16x1xf32>
    %18 = vector.broadcast %17 : vector<2x16x1xf32> to vector<2x16x16xf32>
    %19 = arith.subf %15, %18 : vector<2x16x16xf32>
    %20 = math.exp %19 : vector<2x16x16xf32>
    %cst_7 = arith.constant dense<0.000000e+00> : vector<2x16xf32>
    %21 = vector.multi_reduction <add>, %20, %cst_7 [2] : vector<2x16x16xf32> to vector<2x16xf32>
    %22 = vector.shape_cast %21 : vector<2x16xf32> to vector<2x16x1xf32>
    %23 = tpu.reciprocal %22 {approx = true} : vector<2x16x1xf32> -> vector<2x16x1xf32>
    %24 = vector.broadcast %23 : vector<2x16x1xf32> to vector<2x16x16xf32>
    %25 = arith.mulf %20, %24 : vector<2x16x16xf32>
    %26 = arith.truncf %25 : vector<2x16x16xf32> to vector<2x16x16xbf16>
    "tpu.trace_start"() <{level = 10 : i32, message = "bnm,bmd->bnd"}> : () -> ()
    %cst_8 = arith.constant dense<0.000000e+00> : vector<2x16x32xf32>
    %27 = tpu.matmul %26, %14, %cst_8 {dimension_numbers = #tpu.dot_dimension_numbers<[2], [1], [1], [2], [0, 0, 0, 1, 1, 2], [0], [0]>} : vector<2x16x16xbf16>, vector<2x16x32xbf16>, vector<2x16x32xf32> -> vector<2x16x32xf32>
    "tpu.trace_stop"() : () -> ()
    %28 = vector.shape_cast %27 : vector<2x16x32xf32> to vector<32x32xf32>
    %29 = arith.truncf %28 : vector<32x32xf32> to vector<32x32xbf16>
    %c0_9 = arith.constant 0 : index
    %c0_10 = arith.constant 0 : index
    %c0_11 = arith.constant 0 : index
    %30 = vector.load %arg2[%c0_9, %c0_10, %c0_11] : memref<3x32x128xbf16, #tpu.memory_space<vmem>>, vector<1x32x128xbf16>
    %31 = vector.shape_cast %30 : vector<1x32x128xbf16> to vector<32x128xbf16>
    %cst_12 = arith.constant dense<0.000000e+00> : vector<32x128xf32>
    %32 = tpu.matmul %29, %31, %cst_12 {dimension_numbers = #tpu.dot_dimension_numbers<[1], [0], [0], [1], [0, 0, 1, 1], [], []>} : vector<32x32xbf16>, vector<32x128xbf16>, vector<32x128xf32> -> vector<32x128xf32>
    %33 = arith.addf %5, %32 : vector<32x128xf32>
    %34 = vector.extract_strided_slice %4 {offsets = [0, 32], sizes = [32, 32], strides = [1, 1]} : vector<32x384xf32> to vector<32x32xf32>
    %35 = vector.shape_cast %34 : vector<32x32xf32> to vector<2x16x32xf32>
    %36 = arith.truncf %35 : vector<2x16x32xf32> to vector<2x16x32xbf16>
    %37 = vector.extract_strided_slice %4 {offsets = [0, 160], sizes = [32, 32], strides = [1, 1]} : vector<32x384xf32> to vector<32x32xf32>
    %38 = vector.shape_cast %37 : vector<32x32xf32> to vector<2x16x32xf32>
    %39 = arith.truncf %38 : vector<2x16x32xf32> to vector<2x16x32xbf16>
    %40 = vector.extract_strided_slice %4 {offsets = [0, 288], sizes = [32, 32], strides = [1, 1]} : vector<32x384xf32> to vector<32x32xf32>
    %41 = vector.shape_cast %40 : vector<32x32xf32> to vector<2x16x32xf32>
    %42 = arith.truncf %41 : vector<2x16x32xf32> to vector<2x16x32xbf16>
    "tpu.trace_start"() <{level = 10 : i32, message = "bnd,bmd->bnm"}> : () -> ()
    %cst_13 = arith.constant dense<0.000000e+00> : vector<2x16x16xf32>
    %43 = tpu.matmul %36, %39, %cst_13 {dimension_numbers = #tpu.dot_dimension_numbers<[2], [2], [1], [1], [0, 0, 0, 1, 1, 1], [0], [0]>} : vector<2x16x32xbf16>, vector<2x16x32xbf16>, vector<2x16x16xf32> -> vector<2x16x16xf32>
    "tpu.trace_stop"() : () -> ()
    %cst_14 = arith.constant dense<0xFF800000> : vector<2x16xf32>
    %44 = vector.multi_reduction <maximumf>, %43, %cst_14 [2] : vector<2x16x16xf32> to vector<2x16xf32>
    %45 = vector.shape_cast %44 : vector<2x16xf32> to vector<2x16x1xf32>
    %46 = vector.broadcast %45 : vector<2x16x1xf32> to vector<2x16x16xf32>
    %47 = arith.subf %43, %46 : vector<2x16x16xf32>
    %48 = math.exp %47 : vector<2x16x16xf32>
    %cst_15 = arith.constant dense<0.000000e+00> : vector<2x16xf32>
    %49 = vector.multi_reduction <add>, %48, %cst_15 [2] : vector<2x16x16xf32> to vector<2x16xf32>
    %50 = vector.shape_cast %49 : vector<2x16xf32> to vector<2x16x1xf32>
    %51 = tpu.reciprocal %50 {approx = true} : vector<2x16x1xf32> -> vector<2x16x1xf32>
    %52 = vector.broadcast %51 : vector<2x16x1xf32> to vector<2x16x16xf32>
    %53 = arith.mulf %48, %52 : vector<2x16x16xf32>
    %54 = arith.truncf %53 : vector<2x16x16xf32> to vector<2x16x16xbf16>
    "tpu.trace_start"() <{level = 10 : i32, message = "bnm,bmd->bnd"}> : () -> ()
    %cst_16 = arith.constant dense<0.000000e+00> : vector<2x16x32xf32>
    %55 = tpu.matmul %54, %42, %cst_16 {dimension_numbers = #tpu.dot_dimension_numbers<[2], [1], [1], [2], [0, 0, 0, 1, 1, 2], [0], [0]>} : vector<2x16x16xbf16>, vector<2x16x32xbf16>, vector<2x16x32xf32> -> vector<2x16x32xf32>
    "tpu.trace_stop"() : () -> ()
    %56 = vector.shape_cast %55 : vector<2x16x32xf32> to vector<32x32xf32>
    %57 = arith.truncf %56 : vector<32x32xf32> to vector<32x32xbf16>
    %c1 = arith.constant 1 : index
    %c0_17 = arith.constant 0 : index
    %c0_18 = arith.constant 0 : index
    %58 = vector.load %arg2[%c1, %c0_17, %c0_18] : memref<3x32x128xbf16, #tpu.memory_space<vmem>>, vector<1x32x128xbf16>
    %59 = vector.shape_cast %58 : vector<1x32x128xbf16> to vector<32x128xbf16>
    %cst_19 = arith.constant dense<0.000000e+00> : vector<32x128xf32>
    %60 = tpu.matmul %57, %59, %cst_19 {dimension_numbers = #tpu.dot_dimension_numbers<[1], [0], [0], [1], [0, 0, 1, 1], [], []>} : vector<32x32xbf16>, vector<32x128xbf16>, vector<32x128xf32> -> vector<32x128xf32>
    %61 = arith.addf %33, %60 : vector<32x128xf32>
    %62 = vector.extract_strided_slice %4 {offsets = [0, 64], sizes = [32, 32], strides = [1, 1]} : vector<32x384xf32> to vector<32x32xf32>
    %63 = vector.shape_cast %62 : vector<32x32xf32> to vector<2x16x32xf32>
    %64 = arith.truncf %63 : vector<2x16x32xf32> to vector<2x16x32xbf16>
    %65 = vector.extract_strided_slice %4 {offsets = [0, 192], sizes = [32, 32], strides = [1, 1]} : vector<32x384xf32> to vector<32x32xf32>
    %66 = vector.shape_cast %65 : vector<32x32xf32> to vector<2x16x32xf32>
    %67 = arith.truncf %66 : vector<2x16x32xf32> to vector<2x16x32xbf16>
    %68 = vector.extract_strided_slice %4 {offsets = [0, 320], sizes = [32, 32], strides = [1, 1]} : vector<32x384xf32> to vector<32x32xf32>
    %69 = vector.shape_cast %68 : vector<32x32xf32> to vector<2x16x32xf32>
    %70 = arith.truncf %69 : vector<2x16x32xf32> to vector<2x16x32xbf16>
    "tpu.trace_start"() <{level = 10 : i32, message = "bnd,bmd->bnm"}> : () -> ()
    %cst_20 = arith.constant dense<0.000000e+00> : vector<2x16x16xf32>
    %71 = tpu.matmul %64, %67, %cst_20 {dimension_numbers = #tpu.dot_dimension_numbers<[2], [2], [1], [1], [0, 0, 0, 1, 1, 1], [0], [0]>} : vector<2x16x32xbf16>, vector<2x16x32xbf16>, vector<2x16x16xf32> -> vector<2x16x16xf32>
    "tpu.trace_stop"() : () -> ()
    %cst_21 = arith.constant dense<0xFF800000> : vector<2x16xf32>
    %72 = vector.multi_reduction <maximumf>, %71, %cst_21 [2] : vector<2x16x16xf32> to vector<2x16xf32>
    %73 = vector.shape_cast %72 : vector<2x16xf32> to vector<2x16x1xf32>
    %74 = vector.broadcast %73 : vector<2x16x1xf32> to vector<2x16x16xf32>
    %75 = arith.subf %71, %74 : vector<2x16x16xf32>
    %76 = math.exp %75 : vector<2x16x16xf32>
    %cst_22 = arith.constant dense<0.000000e+00> : vector<2x16xf32>
    %77 = vector.multi_reduction <add>, %76, %cst_22 [2] : vector<2x16x16xf32> to vector<2x16xf32>
    %78 = vector.shape_cast %77 : vector<2x16xf32> to vector<2x16x1xf32>
    %79 = tpu.reciprocal %78 {approx = true} : vector<2x16x1xf32> -> vector<2x16x1xf32>
    %80 = vector.broadcast %79 : vector<2x16x1xf32> to vector<2x16x16xf32>
    %81 = arith.mulf %76, %80 : vector<2x16x16xf32>
    %82 = arith.truncf %81 : vector<2x16x16xf32> to vector<2x16x16xbf16>
    "tpu.trace_start"() <{level = 10 : i32, message = "bnm,bmd->bnd"}> : () -> ()
    %cst_23 = arith.constant dense<0.000000e+00> : vector<2x16x32xf32>
    %83 = tpu.matmul %82, %70, %cst_23 {dimension_numbers = #tpu.dot_dimension_numbers<[2], [1], [1], [2], [0, 0, 0, 1, 1, 2], [0], [0]>} : vector<2x16x16xbf16>, vector<2x16x32xbf16>, vector<2x16x32xf32> -> vector<2x16x32xf32>
    "tpu.trace_stop"() : () -> ()
    %84 = vector.shape_cast %83 : vector<2x16x32xf32> to vector<32x32xf32>
    %85 = arith.truncf %84 : vector<32x32xf32> to vector<32x32xbf16>
    %c2 = arith.constant 2 : index
    %c0_24 = arith.constant 0 : index
    %c0_25 = arith.constant 0 : index
    %86 = vector.load %arg2[%c2, %c0_24, %c0_25] : memref<3x32x128xbf16, #tpu.memory_space<vmem>>, vector<1x32x128xbf16>
    %87 = vector.shape_cast %86 : vector<1x32x128xbf16> to vector<32x128xbf16>
    %cst_26 = arith.constant dense<0.000000e+00> : vector<32x128xf32>
    %88 = tpu.matmul %85, %87, %cst_26 {dimension_numbers = #tpu.dot_dimension_numbers<[1], [0], [0], [1], [0, 0, 1, 1], [], []>} : vector<32x32xbf16>, vector<32x128xbf16>, vector<32x128xf32> -> vector<32x128xf32>
    %89 = arith.addf %61, %88 : vector<32x128xf32>
    %c0_27 = arith.constant 0 : index
    %c0_28 = arith.constant 0 : index
    %90 = vector.load %arg3[%c0_27, %c0_28] : memref<1x128xf32, #tpu.memory_space<vmem>>, vector<1x128xf32>
    %91 = vector.broadcast %90 : vector<1x128xf32> to vector<32x128xf32>
    %92 = arith.addf %89, %91 : vector<32x128xf32>
    %93 = vector.shape_cast %92 : vector<32x128xf32> to vector<2x16x128xf32>
    %c0_29 = arith.constant 0 : index
    %c0_30 = arith.constant 0 : index
    %c0_31 = arith.constant 0 : index
    %94 = vector.load %arg4[%c0_29, %c0_30, %c0_31] : memref<2x16x128xf32, #tpu.memory_space<vmem>>, vector<2x16x128xf32>
    tpu.vector_store %arg4[%c0_29, %c0_30, %c0_31], %93 {strides = array<i32>} : memref<2x16x128xf32, #tpu.memory_space<vmem>>, vector<2x16x128xf32>,
    return
  }
}

</mosaic_0001>

<llo_original>
// kernel: tpu_custom_call.1
$region0: #{tpu_custom_call.1}
  #allocation0 [shape = 'u32[]', space=smem, size = 0x4, offset = 0x4, fixed_abs, tag = 'smem constant byte address 0x4 - core index']
  #allocation1 [shape = 'u32[144,128]{1,0:T(1,128)}', space=vmem, size = 0x12000, scoped, tag = 'internal scratch']
  %s0 = inlined_call_operand.hbm [shape: f32[2,16,96], index: 0, kind: input, shape index: {}]
  %s1 = inlined_call_operand.hbm [shape: bf16[96,384], index: 1, kind: input, shape index: {}]
  %s2 = inlined_call_operand.hbm [shape: bf16[3,32,128], index: 2, kind: input, shape index: {}]
  %s3 = inlined_call_operand.vmem [shape: f32[1,128], index: 3, kind: input, shape index: {}]
  %s4 = inlined_call_operand.hbm [shape: f32[2,16,128], index: 4, kind: output, shape index: {}]
  %s5 = sld [smem:[#allocation0]]
  $region38: #{tpu_custom_call.1} parent=0
    _
  %s7 = ssub.s32 1, %s5
  %s8 = scalar_select 0, %s7, %s5
  $region1: #{tpu_custom_call.1} parent=0
    #allocation2 [shape = 'u8[16384]{0}', space=vmem, size = 0x4000, scoped, tag = 'input window, operand 0, single buffered']
    #allocation3 [shape = 's32[1]{0}', space=sflag, size = 0x4, scoped, tag = 'scoped memory for tpu_custom_call.1']
    #allocation4 [shape = 's32[1]{0}', space=sflag, size = 0x4, scoped, tag = 'scoped memory for tpu_custom_call.1']
    #allocation5 [shape = 'u8[73728]{0}', space=vmem, size = 0x12000, scoped, tag = 'input window, operand 1, single buffered']
    #allocation6 [shape = 's32[1]{0}', space=sflag, size = 0x4, scoped, tag = 'scoped memory for tpu_custom_call.1']
    #allocation7 [shape = 'u8[24576]{0}', space=vmem, size = 0x6000, scoped, tag = 'input window, operand 2, single buffered']
    #allocation8 [shape = 'u8[16384]{0}', space=vmem, size = 0x4000, scoped, tag = 'output window, operand 0, single buffered']
    %9 = vsyncpa [#allocation3], 0
    %10 = vsyncpa [#allocation6], 0
    %11 = vsyncpa [#allocation4], 0
    // Predicated region
    $region2: #{tpu_custom_call.1} parent=1 // pred_check
      _
    $region3: #{tpu_custom_call.1} parent=1 // pred_check_branch
      %13 = sbr.rel (0) target = $region5
    $region4: #{tpu_custom_call.1} parent=1 // pred_region
      %s15 = ssub.s32 512, 512
      %16 = vsyncadd [#allocation3], %s15
      %s17 = sshll.u32 [#allocation2], 4
      %s18 = int_to_ptr.vmem [resolvable:$true] %s17
      %23 = dma.hbm_to_vmem [thread:$0]  %s0, 512, %s18, [#allocation3], 128, 128, 8
    $region5: #{tpu_custom_call.1} parent=1 // pred_fallthru
      _
    // Predicated region
    $region6: #{tpu_custom_call.1} parent=1 // pred_check
      _
    $region7: #{tpu_custom_call.1} parent=1 // pred_check_branch
      %25 = sbr.rel (0) target = $region9
    $region8: #{tpu_custom_call.1} parent=1 // pred_region
      %s27 = ssub.s32 2304, 2304
      %28 = vsyncadd [#allocation6], %s27
      %s29 = sshll.u32 [#allocation5], 4
      %s30 = int_to_ptr.vmem [resolvable:$true] %s29
      %35 = dma.hbm_to_vmem [thread:$0]  %s1, 2304, %s30, [#allocation6], 192, 192, 12
    $region9: #{tpu_custom_call.1} parent=1 // pred_fallthru
      _
    // Predicated region
    $region10: #{tpu_custom_call.1} parent=1 // pred_check
      _
    $region11: #{tpu_custom_call.1} parent=1 // pred_check_branch
      %37 = sbr.rel (0) target = $region13
    $region12: #{tpu_custom_call.1} parent=1 // pred_region
      %s39 = ssub.s32 768, 768
      %40 = vsyncadd [#allocation6], %s39
      %s41 = sshll.u32 [#allocation7], 4
      %s42 = int_to_ptr.vmem [resolvable:$true] %s41
      %47 = dma.hbm_to_vmem [thread:$0]  %s2, 768, %s42, [#allocation6], 64, 64, 4
    $region13: #{tpu_custom_call.1} parent=1 // pred_fallthru
      _
    // Predicated region
    $region14: #{tpu_custom_call.1} parent=1 // pred_check
      _
    $region15: #{tpu_custom_call.1} parent=1 // pred_check_branch
      %49 = sbr.rel (0) target = $region17
    $region16: #{tpu_custom_call.1} parent=1 // pred_region
      _
    $region17: #{tpu_custom_call.1} parent=1 // pred_fallthru
      _
    // Predicated region
    $region18: #{tpu_custom_call.1} parent=1 // pred_check
      _
    $region19: #{tpu_custom_call.1} parent=1 // pred_check_branch
      %51 = sbr.rel (0) target = $region21
    $region20: #{tpu_custom_call.1} parent=1 // pred_region
      %52 = dma.done [#allocation3], 512
    $region21: #{tpu_custom_call.1} parent=1 // pred_fallthru
      _
    // Predicated region
    $region22: #{tpu_custom_call.1} parent=1 // pred_check
      _
    $region23: #{tpu_custom_call.1} parent=1 // pred_check_branch
      %54 = sbr.rel (0) target = $region25
    $region24: #{tpu_custom_call.1} parent=1 // pred_region
      %55 = dma.done [#allocation6], 2304
    $region25: #{tpu_custom_call.1} parent=1 // pred_fallthru
      _
    // Predicated region
    $region26: #{tpu_custom_call.1} parent=1 // pred_check
      _
    $region27: #{tpu_custom_call.1} parent=1 // pred_check_branch
      %57 = sbr.rel (0) target = $region29
    $region28: #{tpu_custom_call.1} parent=1 // pred_region
      %58 = dma.done [#allocation6], 768
    $region29: #{tpu_custom_call.1} parent=1 // pred_fallthru
      _
    %v60 = vld [vmem:[#allocation2] sm:$0xff]
    %v61 = vld [vmem:[#allocation2 + $0x8] sm:$0xff]
    %v62 = vld [vmem:[#allocation2 + $0x10] sm:$0xff]
    %v63 = vld [vmem:[#allocation2 + $0x18] sm:$0xff]
    %v64 = vpack.c.bf16 %v61, %v60
    %v65 = vpack.c.bf16 %v63, %v62
    %v66 = vld [vmem:[#allocation5] sm:$0xff]
    %v67 = vld [vmem:[#allocation5 + $0x8] sm:$0xf]
    %v68 = vld [vmem:[#allocation5 + $0xc] sm:$0xff]
    %v69 = vld [vmem:[#allocation5 + $0x14] sm:$0xf]
    %v70 = vld [vmem:[#allocation5 + $0x18] sm:$0xff]
    %v71 = vld [vmem:[#allocation5 + $0x20] sm:$0xf]
    %v72 = vld [vmem:[#allocation5 + $0x24] sm:$0xff]
    %v73 = vld [vmem:[#allocation5 + $0x2c] sm:$0xf]
    %v74 = vld [vmem:[#allocation5 + $0x30] sm:$0xff]
    %v75 = vld [vmem:[#allocation5 + $0x38] sm:$0xf]
    %v76 = vld [vmem:[#allocation5 + $0x3c] sm:$0xff]
    %v77 = vld [vmem:[#allocation5 + $0x44] sm:$0xf]
    %v78 = vld [vmem:[#allocation5 + $0x48] sm:$0xff]
    %v79 = vld [vmem:[#allocation5 + $0x50] sm:$0xf]
    %v80 = vld [vmem:[#allocation5 + $0x54] sm:$0xff]
    %v81 = vld [vmem:[#allocation5 + $0x5c] sm:$0xf]
    %v82 = vld [vmem:[#allocation5 + $0x60] sm:$0xff]
    %v83 = vld [vmem:[#allocation5 + $0x68] sm:$0xf]
    %v84 = vld [vmem:[#allocation5 + $0x6c] sm:$0xff]
    %v85 = vld [vmem:[#allocation5 + $0x74] sm:$0xf]
    %v86 = vld [vmem:[#allocation5 + $0x78] sm:$0xff]
    %v87 = vld [vmem:[#allocation5 + $0x80] sm:$0xf]
    %v88 = vld [vmem:[#allocation5 + $0x84] sm:$0xff]
    %v89 = vld [vmem:[#allocation5 + $0x8c] sm:$0xf]
    %v114 = vunpack.c.l.b16 %v66
    %v115 = vunpack.c.h.b16 %v66
    %v116 = vunpack.c.l.b16 %v67
    %v117 = vunpack.c.l.b16 %v68
    %v118 = vunpack.c.h.b16 %v68
    %v119 = vunpack.c.l.b16 %v69
    %v120 = vunpack.c.l.b16 %v70
    %v121 = vunpack.c.h.b16 %v70
    %v122 = vunpack.c.l.b16 %v71
    %v123 = vunpack.c.l.b16 %v72
    %v124 = vunpack.c.h.b16 %v72
    %v125 = vunpack.c.l.b16 %v73
    %v126 = vunpack.c.l.b16 %v74
    %v127 = vunpack.c.h.b16 %v74
    %v128 = vunpack.c.l.b16 %v75
    %v129 = vunpack.c.l.b16 %v76
    %v130 = vunpack.c.h.b16 %v76
    %v131 = vunpack.c.l.b16 %v77
    %v132 = vunpack.c.l.b16 %v78
    %v133 = vunpack.c.h.b16 %v78
    %v134 = vunpack.c.l.b16 %v79
    %v135 = vunpack.c.l.b16 %v80
    %v136 = vunpack.c.h.b16 %v80
    %v137 = vunpack.c.l.b16 %v81
    %v138 = vunpack.c.l.b16 %v82
    %v139 = vunpack.c.h.b16 %v82
    %v140 = vunpack.c.l.b16 %v83
    %v141 = vunpack.c.l.b16 %v84
    %v142 = vunpack.c.h.b16 %v84
    %v143 = vunpack.c.l.b16 %v85
    %v144 = vunpack.c.l.b16 %v86
    %v145 = vunpack.c.h.b16 %v86
    %v146 = vunpack.c.l.b16 %v87
    %v147 = vunpack.c.l.b16 %v88
    %v148 = vunpack.c.h.b16 %v88
    %v149 = vunpack.c.l.b16 %v89
    %v150 = vpack.c.b16 %v117, %v114
    %v151 = vpack.c.b16 %v118, %v115
    %v152 = vpack.c.b16 %v119, %v116
    %v153 = vpack.c.b16 %v123, %v120
    %v154 = vpack.c.b16 %v124, %v121
    %v155 = vpack.c.b16 %v125, %v122
    %v156 = vpack.c.b16 %v129, %v126
    %v157 = vpack.c.b16 %v130, %v127
    %v158 = vpack.c.b16 %v131, %v128
    %v159 = vpack.c.b16 %v135, %v132
    %v160 = vpack.c.b16 %v136, %v133
    %v161 = vpack.c.b16 %v137, %v134
    %v162 = vpack.c.b16 %v141, %v138
    %v163 = vpack.c.b16 %v142, %v139
    %v164 = vpack.c.b16 %v143, %v140
    %v165 = vpack.c.b16 %v147, %v144
    %v166 = vpack.c.b16 %v148, %v145
    %v167 = vpack.c.b16 %v149, %v146
    %vm186 = vcmask 785408
    %v188 = vsel %vm186, %v64, 0
    %v191 = vsel %vm186, %v65, 0
    %193 = vmatprep.subr.bf16.mxu0 0
    %194 = vmatpush1.bf16.msra.mxu0 0
    %195 = vmatprep.subr.bf16.mxu0 0
    %196 = vmatpush1.bf16.msra.mxu0 0
    %197 = vmatprep.subr.bf16.mxu0 %v166
    %198 = vmatpush1.bf16.msra.mxu0 %v165
    %199 = vmatprep.subr.bf16.mxu0 %v163
    %200 = vmatpush1.bf16.msra.mxu0 %v162
    %201 = vmatprep.subr.bf16.mxu0 %v160
    %202 = vmatpush1.bf16.msra.mxu0 %v159
    %203 = vmatprep.subr.bf16.mxu0 %v157
    %204 = vmatpush1.bf16.msra.mxu0 %v156
    %205 = vmatprep.subr.bf16.mxu0 %v154
    %206 = vmatpush1.bf16.msra.mxu0 %v153
    %207 = vmatprep.subr.bf16.mxu0 %v151
    %208 = vmatpush1.bf16.msra.mxu0 %v150
    %209 = vmatprep.subr.bf16.mxu0 0
    %210 = vmatpush2.bf16.msra.mxu0 0
    %211 = vmatprep.subr.bf16.mxu0 0
    %212 = vmatpush2.bf16.msra.mxu0 0
    %213 = vmatprep.subr.bf16.mxu0 0
    %214 = vmatpush2.bf16.msra.mxu0 0
    %215 = vmatprep.subr.bf16.mxu0 0
    %216 = vmatpush2.bf16.msra.mxu0 0
    %217 = vmatprep.subr.bf16.mxu0 0
    %218 = vmatpush2.bf16.msra.mxu0 0
    %219 = vmatprep.subr.bf16.mxu0 0
    %220 = vmatpush2.bf16.msra.mxu0 0
    %221 = vmatprep.subr.bf16.mxu0 0
    %222 = vmatpush2.bf16.msra.mxu0 0
    %223 = vmatprep.subr.bf16.mxu0 0
    %224 = vmatpush2.bf16.msra.mxu0 0
    %225 = vmatprep.mubr.bf16.mxu0 0
    %226 = vmatmul.mubr.bf16.gmra.mxu0 %v188
    %v227 = vpop.f32.mrf.mxu0
    %v228 = vadd.f32 0.0, %v227
    %v229 = vpop.f32.mrf.mxu0
    %v230 = vadd.f32 0.0, %v229
    %v231 = vpop.f32.mrf.mxu0
    %v232 = vadd.f32 0.0, %v231
    %v233 = vpop.f32.mrf.mxu0
    %v234 = vadd.f32 0.0, %v233
    %235 = vmatprep.mubr.bf16.mxu0 0
    %236 = vmatmul.mubr.bf16.gmra.mxu0 %v191
    %v237 = vpop.f32.mrf.mxu0
    %v238 = vadd.f32 0.0, %v237
    %v239 = vpop.f32.mrf.mxu0
    %v240 = vadd.f32 0.0, %v239
    %v241 = vpop.f32.mrf.mxu0
    %v242 = vadd.f32 0.0, %v241
    %v243 = vpop.f32.mrf.mxu0
    %v244 = vadd.f32 0.0, %v243
    %245 = vdwg.mxu0
    %246 = vmatprep.subr.bf16.mxu0 0
    %247 = vmatpush1.bf16.msra.mxu0 0
    %248 = vmatprep.subr.bf16.mxu0 0
    %249 = vmatpush1.bf16.msra.mxu0 0
    %250 = vmatprep.subr.bf16.mxu0 0
    %251 = vmatpush1.bf16.msra.mxu0 %v167
    %252 = vmatprep.subr.bf16.mxu0 0
    %253 = vmatpush1.bf16.msra.mxu0 %v164
    %254 = vmatprep.subr.bf16.mxu0 0
    %255 = vmatpush1.bf16.msra.mxu0 %v161
    %256 = vmatprep.subr.bf16.mxu0 0
    %257 = vmatpush1.bf16.msra.mxu0 %v158
    %258 = vmatprep.subr.bf16.mxu0 0
    %259 = vmatpush1.bf16.msra.mxu0 %v155
    %260 = vmatprep.subr.bf16.mxu0 0
    %261 = vmatpush1.bf16.msra.mxu0 %v152
    %262 = vmatprep.subr.bf16.mxu0 0
    %263 = vmatpush2.bf16.msra.mxu0 0
    %264 = vmatprep.subr.bf16.mxu0 0
    %265 = vmatpush2.bf16.msra.mxu0 0
    %266 = vmatprep.subr.bf16.mxu0 0
    %267 = vmatpush2.bf16.msra.mxu0 0
    %268 = vmatprep.subr.bf16.mxu0 0
    %269 = vmatpush2.bf16.msra.mxu0 0
    %270 = vmatprep.subr.bf16.mxu0 0
    %271 = vmatpush2.bf16.msra.mxu0 0
    %272 = vmatprep.subr.bf16.mxu0 0
    %273 = vmatpush2.bf16.msra.mxu0 0
    %274 = vmatprep.subr.bf16.mxu0 0
    %275 = vmatpush2.bf16.msra.mxu0 0
    %276 = vmatprep.subr.bf16.mxu0 0
    %277 = vmatpush2.bf16.msra.mxu0 0
    %278 = vmatprep.mubr.bf16.mxu0 0
    %279 = vmatmul.mubr.bf16.gmra.mxu0 %v188
    %v280 = vpop.f32.mrf.mxu0
    %v281 = vadd.f32 0.0, %v280
    %v282 = vpop.f32.mrf.mxu0
    %v283 = vpop.f32.mrf.mxu0
    %v284 = vadd.f32 0.0, %v283
    %v285 = vpop.f32.mrf.mxu0
    %286 = vmatprep.mubr.bf16.mxu0 0
    %287 = vmatmul.mubr.bf16.gmra.mxu0 %v191
    %v288 = vpop.f32.mrf.mxu0
    %v289 = vadd.f32 0.0, %v288
    %v290 = vpop.f32.mrf.mxu0
    %v291 = vpop.f32.mrf.mxu0
    %v292 = vadd.f32 0.0, %v291
    %v293 = vpop.f32.mrf.mxu0
    %294 = vdwg.mxu0
    %v295 = vpack.c.bf16 %v232, %v228
    %v296 = vpack.c.bf16 %v242, %v238
    %v297 = vpack.c.bf16 %v234, %v230
    %v298 = vpack.c.bf16 %v244, %v240
    %v299 = vpack.c.bf16 %v284, %v281
    %v300 = vpack.c.bf16 %v292, %v289
    %vm301 = vcmask 261120
    %v303 = vsel %vm301, %v295, 0
    %v306 = vsel %vm301, %v297, 0
    %308 = vmatprep.subr.bf16.mxu0 0
    %309 = vmatpush1.bf16.xpose.msra.mxu0 0
    %310 = vmatprep.subr.bf16.mxu0 0
    %311 = vmatpush1.bf16.xpose.msra.mxu0 0
    %312 = vmatprep.subr.bf16.mxu0 0
    %313 = vmatpush1.bf16.xpose.msra.mxu0 0
    %314 = vmatprep.subr.bf16.mxu0 0
    %315 = vmatpush1.bf16.xpose.msra.mxu0 0
    %316 = vmatprep.subr.bf16.mxu0 0
    %317 = vmatpush1.bf16.xpose.msra.mxu0 0
    %318 = vmatprep.subr.bf16.mxu0 0
    %319 = vmatpush1.bf16.xpose.msra.mxu0 0
    %320 = vmatprep.subr.bf16.mxu0 0
    %321 = vmatpush1.bf16.xpose.msra.mxu0 0
    %322 = vmatprep.subr.bf16.mxu0 0
    %323 = vmatpush1.bf16.xpose.msra.mxu0 %v306
    %324 = vmatprep.subr.bf16.mxu0 0
    %325 = vmatpush2.bf16.xpose.msra.mxu0 0
    %326 = vmatprep.subr.bf16.mxu0 0
    %327 = vmatpush2.bf16.xpose.msra.mxu0 0
    %328 = vmatprep.subr.bf16.mxu0 0
    %329 = vmatpush2.bf16.xpose.msra.mxu0 0
    %330 = vmatprep.subr.bf16.mxu0 0
    %331 = vmatpush2.bf16.xpose.msra.mxu0 0
    %332 = vmatprep.subr.bf16.mxu0 0
    %333 = vmatpush2.bf16.xpose.msra.mxu0 0
    %334 = vmatprep.subr.bf16.mxu0 0
    %335 = vmatpush2.bf16.xpose.msra.mxu0 0
    %336 = vmatprep.subr.bf16.mxu0 0
    %337 = vmatpush2.bf16.xpose.msra.mxu0 0
    %338 = vmatprep.subr.bf16.mxu0 0
    %339 = vmatpush2.bf16.xpose.msra.mxu0 0
    %340 = vmatprep.mubr.bf16.mxu0 0
    %341 = vmatmul.mubr.bf16.gmra.mxu0 %v303
    %v342 = vpop.f32.mrf.mxu0
    %v343 = vadd.f32 0.0, %v342
    %v344 = vpop.f32.mrf.mxu0
    %v345 = vpop.f32.mrf.mxu0
    %v346 = vadd.f32 0.0, %v345
    %v347 = vpop.f32.mrf.mxu0
    %348 = vdwg.mxu0
    %v350 = vsel %vm301, %v296, 0
    %v353 = vsel %vm301, %v298, 0
    %355 = vmatprep.subr.bf16.mxu0 0
    %356 = vmatpush1.bf16.xpose.msra.mxu0 0
    %357 = vmatprep.subr.bf16.mxu0 0
    %358 = vmatpush1.bf16.xpose.msra.mxu0 0
    %359 = vmatprep.subr.bf16.mxu0 0
    %360 = vmatpush1.bf16.xpose.msra.mxu0 0
    %361 = vmatprep.subr.bf16.mxu0 0
    %362 = vmatpush1.bf16.xpose.msra.mxu0 0
    %363 = vmatprep.subr.bf16.mxu0 0
    %364 = vmatpush1.bf16.xpose.msra.mxu0 0
    %365 = vmatprep.subr.bf16.mxu0 0
    %366 = vmatpush1.bf16.xpose.msra.mxu0 0
    %367 = vmatprep.subr.bf16.mxu0 0
    %368 = vmatpush1.bf16.xpose.msra.mxu0 0
    %369 = vmatprep.subr.bf16.mxu0 0
    %370 = vmatpush1.bf16.xpose.msra.mxu0 %v353
    %371 = vmatprep.subr.bf16.mxu0 0
    %372 = vmatpush2.bf16.xpose.msra.mxu0 0
    %373 = vmatprep.subr.bf16.mxu0 0
    %374 = vmatpush2.bf16.xpose.msra.mxu0 0
    %375 = vmatprep.subr.bf16.mxu0 0
    %376 = vmatpush2.bf16.xpose.msra.mxu0 0
    %377 = vmatprep.subr.bf16.mxu0 0
    %378 = vmatpush2.bf16.xpose.msra.mxu0 0
    %379 = vmatprep.subr.bf16.mxu0 0
    %380 = vmatpush2.bf16.xpose.msra.mxu0 0
    %381 = vmatprep.subr.bf16.mxu0 0
    %382 = vmatpush2.bf16.xpose.msra.mxu0 0
    %383 = vmatprep.subr.bf16.mxu0 0
    %384 = vmatpush2.bf16.xpose.msra.mxu0 0
    %385 = vmatprep.subr.bf16.mxu0 0
    %386 = vmatpush2.bf16.xpose.msra.mxu0 0
    %387 = vmatprep.mubr.bf16.mxu0 0
    %388 = vmatmul.mubr.bf16.gmra.mxu0 %v350
    %v389 = vpop.f32.mrf.mxu0
    %v390 = vadd.f32 0.0, %v389
    %v391 = vpop.f32.mrf.mxu0
    %v392 = vpop.f32.mrf.mxu0
    %v393 = vadd.f32 0.0, %v392
    %v394 = vpop.f32.mrf.mxu0
    %395 = vdwg.mxu0
    %vm396 = vcmask 130048
    %v397 = vsel %vm396, %v343, -inf
    %398 = vmax.xlane.f32.xlu0 %v397
    %v399 = vpop.xlane.xlu0 %398
    %v400 = vsel %vm396, %v346, -inf
    %401 = vmax.xlane.f32.xlu0 %v400
    %v402 = vpop.xlane.xlu0 %401
    %v403 = vsel %vm396, %v390, -inf
    %404 = vmax.xlane.f32.xlu0 %v403
    %v405 = vpop.xlane.xlu0 %404
    %v406 = vsel %vm396, %v393, -inf
    %407 = vmax.xlane.f32.xlu0 %v406
    %v408 = vpop.xlane.xlu0 %407
    %v409 = vsub.f32 %v343, %v399
    %v410 = vsub.f32 %v346, %v402
    %v411 = vsub.f32 %v390, %v405
    %v412 = vsub.f32 %v393, %v408
    %v413 = vmul.f32 %v409, 1.442695
    %v414 = vpow.pop %v413
    %v415 = vmul.f32 %v410, 1.442695
    %v416 = vpow.pop %v415
    %v417 = vmul.f32 %v411, 1.442695
    %v418 = vpow.pop %v417
    %v419 = vmul.f32 %v412, 1.442695
    %v420 = vpow.pop %v419
    %v421 = vsel %vm396, %v414, 0.0
    %422 = vadd.xlane.f32.xlu0 %v421
    %v423 = vpop.xlane.xlu0 %422
    %v424 = vsel %vm396, %v416, 0.0
    %425 = vadd.xlane.f32.xlu0 %v424
    %v426 = vpop.xlane.xlu0 %425
    %v427 = vsel %vm396, %v418, 0.0
    %428 = vadd.xlane.f32.xlu0 %v427
    %v429 = vpop.xlane.xlu0 %428
    %v430 = vsel %vm396, %v420, 0.0
    %431 = vadd.xlane.f32.xlu0 %v430
    %v432 = vpop.xlane.xlu0 %431
    %v433 = vrcp.pop %v423
    %v434 = vrcp.pop %v426
    %v435 = vrcp.pop %v429
    %v436 = vrcp.pop %v432
    %v437 = vmul.f32 %v414, %v433
    %v438 = vmul.f32 %v416, %v434
    %v439 = vmul.f32 %v418, %v435
    %v440 = vmul.f32 %v420, %v436
    %v441 = vpack.c.bf16 %v438, %v437
    %v442 = vpack.c.bf16 %v440, %v439
    %v444 = vsel %vm396, %v441, 0
    %446 = vmatprep.subr.bf16.mxu0 0
    %447 = vmatpush1.bf16.msra.mxu0 0
    %448 = vmatprep.subr.bf16.mxu0 0
    %449 = vmatpush1.bf16.msra.mxu0 0
    %450 = vmatprep.subr.bf16.mxu0 0
    %451 = vmatpush1.bf16.msra.mxu0 0
    %452 = vmatprep.subr.bf16.mxu0 0
    %453 = vmatpush1.bf16.msra.mxu0 0
    %454 = vmatprep.subr.bf16.mxu0 0
    %455 = vmatpush1.bf16.msra.mxu0 0
    %456 = vmatprep.subr.bf16.mxu0 0
    %457 = vmatpush1.bf16.msra.mxu0 0
    %458 = vmatprep.subr.bf16.mxu0 0
    %459 = vmatpush1.bf16.msra.mxu0 0
    %460 = vmatprep.subr.bf16.mxu0 0
    %461 = vmatpush1.bf16.msra.mxu0 %v299
    %462 = vmatprep.subr.bf16.mxu0 0
    %463 = vmatpush2.bf16.msra.mxu0 0
    %464 = vmatprep.subr.bf16.mxu0 0
    %465 = vmatpush2.bf16.msra.mxu0 0
    %466 = vmatprep.subr.bf16.mxu0 0
    %467 = vmatpush2.bf16.msra.mxu0 0
    %468 = vmatprep.subr.bf16.mxu0 0
    %469 = vmatpush2.bf16.msra.mxu0 0
    %470 = vmatprep.subr.bf16.mxu0 0
    %471 = vmatpush2.bf16.msra.mxu0 0
    %472 = vmatprep.subr.bf16.mxu0 0
    %473 = vmatpush2.bf16.msra.mxu0 0
    %474 = vmatprep.subr.bf16.mxu0 0
    %475 = vmatpush2.bf16.msra.mxu0 0
    %476 = vmatprep.subr.bf16.mxu0 0
    %477 = vmatpush2.bf16.msra.mxu0 0
    %478 = vmatprep.mubr.bf16.mxu0 0
    %479 = vmatmul.mubr.bf16.gmra.mxu0 %v444
    %v480 = vpop.f32.mrf.mxu0
    %v481 = vadd.f32 0.0, %v480
    %v482 = vpop.f32.mrf.mxu0
    %v483 = vpop.f32.mrf.mxu0
    %v484 = vadd.f32 0.0, %v483
    %v485 = vpop.f32.mrf.mxu0
    %486 = vdwg.mxu0
    %v488 = vsel %vm396, %v442, 0
    %490 = vmatprep.subr.bf16.mxu0 0
    %491 = vmatpush1.bf16.msra.mxu0 0
    %492 = vmatprep.subr.bf16.mxu0 0
    %493 = vmatpush1.bf16.msra.mxu0 0
    %494 = vmatprep.subr.bf16.mxu0 0
    %495 = vmatpush1.bf16.msra.mxu0 0
    %496 = vmatprep.subr.bf16.mxu0 0
    %497 = vmatpush1.bf16.msra.mxu0 0
    %498 = vmatprep.subr.bf16.mxu0 0
    %499 = vmatpush1.bf16.msra.mxu0 0
    %500 = vmatprep.subr.bf16.mxu0 0
    %501 = vmatpush1.bf16.msra.mxu0 0
    %502 = vmatprep.subr.bf16.mxu0 0
    %503 = vmatpush1.bf16.msra.mxu0 0
    %504 = vmatprep.subr.bf16.mxu0 0
    %505 = vmatpush1.bf16.msra.mxu0 %v300
    %506 = vmatprep.subr.bf16.mxu0 0
    %507 = vmatpush2.bf16.msra.mxu0 0
    %508 = vmatprep.subr.bf16.mxu0 0
    %509 = vmatpush2.bf16.msra.mxu0 0
    %510 = vmatprep.subr.bf16.mxu0 0
    %511 = vmatpush2.bf16.msra.mxu0 0
    %512 = vmatprep.subr.bf16.mxu0 0
    %513 = vmatpush2.bf16.msra.mxu0 0
    %514 = vmatprep.subr.bf16.mxu0 0
    %515 = vmatpush2.bf16.msra.mxu0 0
    %516 = vmatprep.subr.bf16.mxu0 0
    %517 = vmatpush2.bf16.msra.mxu0 0
    %518 = vmatprep.subr.bf16.mxu0 0
    %519 = vmatpush2.bf16.msra.mxu0 0
    %520 = vmatprep.subr.bf16.mxu0 0
    %521 = vmatpush2.bf16.msra.mxu0 0
    %522 = vmatprep.mubr.bf16.mxu0 0
    %523 = vmatmul.mubr.bf16.gmra.mxu0 %v488
    %v524 = vpop.f32.mrf.mxu0
    %v525 = vadd.f32 0.0, %v524
    %v526 = vpop.f32.mrf.mxu0
    %v527 = vpop.f32.mrf.mxu0
    %v528 = vadd.f32 0.0, %v527
    %v529 = vpop.f32.mrf.mxu0
    %530 = vdwg.mxu0
    %v531 = vpack.c.bf16 %v484, %v481
    %v532 = vpack.c.bf16 %v528, %v525
    %v533 = vld [vmem:[#allocation7] sm:$0xf]
    %v534 = vld [vmem:[#allocation7 + $0x4] sm:$0xf]
    %v535 = vld [vmem:[#allocation7 + $0x8] sm:$0xf]
    %v536 = vld [vmem:[#allocation7 + $0xc] sm:$0xf]
    %538 = vrot.lane.b32.xlu0 %v295, 96
    %v539 = vpop.permute.xlu0 %538
    %541 = vrot.lane.b32.xlu0 %v297, 96
    %v542 = vpop.permute.xlu0 %541
    %v544 = vsel %vm301, %v539, 0
    %v547 = vsel %vm301, %v542, 0
    %549 = vmatprep.subr.bf16.mxu0 0
    %550 = vmatpush1.bf16.xpose.msra.mxu0 0
    %551 = vmatprep.subr.bf16.mxu0 0
    %552 = vmatpush1.bf16.xpose.msra.mxu0 0
    %553 = vmatprep.subr.bf16.mxu0 0
    %554 = vmatpush1.bf16.xpose.msra.mxu0 0
    %555 = vmatprep.subr.bf16.mxu0 0
    %556 = vmatpush1.bf16.xpose.msra.mxu0 0
    %557 = vmatprep.subr.bf16.mxu0 0
    %558 = vmatpush1.bf16.xpose.msra.mxu0 0
    %559 = vmatprep.subr.bf16.mxu0 0
    %560 = vmatpush1.bf16.xpose.msra.mxu0 0
    %561 = vmatprep.subr.bf16.mxu0 0
    %562 = vmatpush1.bf16.xpose.msra.mxu0 0
    %563 = vmatprep.subr.bf16.mxu0 0
    %564 = vmatpush1.bf16.xpose.msra.mxu0 %v547
    %565 = vmatprep.subr.bf16.mxu0 0
    %566 = vmatpush2.bf16.xpose.msra.mxu0 0
    %567 = vmatprep.subr.bf16.mxu0 0
    %568 = vmatpush2.bf16.xpose.msra.mxu0 0
    %569 = vmatprep.subr.bf16.mxu0 0
    %570 = vmatpush2.bf16.xpose.msra.mxu0 0
    %571 = vmatprep.subr.bf16.mxu0 0
    %572 = vmatpush2.bf16.xpose.msra.mxu0 0
    %573 = vmatprep.subr.bf16.mxu0 0
    %574 = vmatpush2.bf16.xpose.msra.mxu0 0
    %575 = vmatprep.subr.bf16.mxu0 0
    %576 = vmatpush2.bf16.xpose.msra.mxu0 0
    %577 = vmatprep.subr.bf16.mxu0 0
    %578 = vmatpush2.bf16.xpose.msra.mxu0 0
    %579 = vmatprep.subr.bf16.mxu0 0
    %580 = vmatpush2.bf16.xpose.msra.mxu0 0
    %581 = vmatprep.mubr.bf16.mxu0 0
    %582 = vmatmul.mubr.bf16.gmra.mxu0 %v544
    %v583 = vpop.f32.mrf.mxu0
    %v584 = vadd.f32 0.0, %v583
    %v585 = vpop.f32.mrf.mxu0
    %v586 = vpop.f32.mrf.mxu0
    %v587 = vadd.f32 0.0, %v586
    %v588 = vpop.f32.mrf.mxu0
    %589 = vdwg.mxu0
    %591 = vrot.lane.b32.xlu0 %v296, 96
    %v592 = vpop.permute.xlu0 %591
    %594 = vrot.lane.b32.xlu0 %v298, 96
    %v595 = vpop.permute.xlu0 %594
    %v597 = vsel %vm301, %v592, 0
    %v600 = vsel %vm301, %v595, 0
    %602 = vmatprep.subr.bf16.mxu0 0
    %603 = vmatpush1.bf16.xpose.msra.mxu0 0
    %604 = vmatprep.subr.bf16.mxu0 0
    %605 = vmatpush1.bf16.xpose.msra.mxu0 0
    %606 = vmatprep.subr.bf16.mxu0 0
    %607 = vmatpush1.bf16.xpose.msra.mxu0 0
    %608 = vmatprep.subr.bf16.mxu0 0
    %609 = vmatpush1.bf16.xpose.msra.mxu0 0
    %610 = vmatprep.subr.bf16.mxu0 0
    %611 = vmatpush1.bf16.xpose.msra.mxu0 0
    %612 = vmatprep.subr.bf16.mxu0 0
    %613 = vmatpush1.bf16.xpose.msra.mxu0 0
    %614 = vmatprep.subr.bf16.mxu0 0
    %615 = vmatpush1.bf16.xpose.msra.mxu0 0
    %616 = vmatprep.subr.bf16.mxu0 0
    %617 = vmatpush1.bf16.xpose.msra.mxu0 %v600
    %618 = vmatprep.subr.bf16.mxu0 0
    %619 = vmatpush2.bf16.xpose.msra.mxu0 0
    %620 = vmatprep.subr.bf16.mxu0 0
    %621 = vmatpush2.bf16.xpose.msra.mxu0 0
    %622 = vmatprep.subr.bf16.mxu0 0
    %623 = vmatpush2.bf16.xpose.msra.mxu0 0
    %624 = vmatprep.subr.bf16.mxu0 0
    %625 = vmatpush2.bf16.xpose.msra.mxu0 0
    %626 = vmatprep.subr.bf16.mxu0 0
    %627 = vmatpush2.bf16.xpose.msra.mxu0 0
    %628 = vmatprep.subr.bf16.mxu0 0
    %629 = vmatpush2.bf16.xpose.msra.mxu0 0
    %630 = vmatprep.subr.bf16.mxu0 0
    %631 = vmatpush2.bf16.xpose.msra.mxu0 0
    %632 = vmatprep.subr.bf16.mxu0 0
    %633 = vmatpush2.bf16.xpose.msra.mxu0 0
    %634 = vmatprep.mubr.bf16.mxu0 0
    %635 = vmatmul.mubr.bf16.gmra.mxu0 %v597
    %v636 = vpop.f32.mrf.mxu0
    %v637 = vadd.f32 0.0, %v636
    %v638 = vpop.f32.mrf.mxu0
    %v639 = vpop.f32.mrf.mxu0
    %v640 = vadd.f32 0.0, %v639
    %v641 = vpop.f32.mrf.mxu0
    %642 = vdwg.mxu0
    %v643 = vsel %vm396, %v584, -inf
    %644 = vmax.xlane.f32.xlu0 %v643
    %v645 = vpop.xlane.xlu0 %644
    %v646 = vsel %vm396, %v587, -inf
    %647 = vmax.xlane.f32.xlu0 %v646
    %v648 = vpop.xlane.xlu0 %647
    %v649 = vsel %vm396, %v637, -inf
    %650 = vmax.xlane.f32.xlu0 %v649
    %v651 = vpop.xlane.xlu0 %650
    %v652 = vsel %vm396, %v640, -inf
    %653 = vmax.xlane.f32.xlu0 %v652
    %v654 = vpop.xlane.xlu0 %653
    %v655 = vsub.f32 %v584, %v645
    %v656 = vsub.f32 %v587, %v648
    %v657 = vsub.f32 %v637, %v651
    %v658 = vsub.f32 %v640, %v654
    %v659 = vmul.f32 %v655, 1.442695
    %v660 = vpow.pop %v659
    %v661 = vmul.f32 %v656, 1.442695
    %v662 = vpow.pop %v661
    %v663 = vmul.f32 %v657, 1.442695
    %v664 = vpow.pop %v663
    %v665 = vmul.f32 %v658, 1.442695
    %v666 = vpow.pop %v665
    %v667 = vsel %vm396, %v660, 0.0
    %668 = vadd.xlane.f32.xlu0 %v667
    %v669 = vpop.xlane.xlu0 %668
    %v670 = vsel %vm396, %v662, 0.0
    %671 = vadd.xlane.f32.xlu0 %v670
    %v672 = vpop.xlane.xlu0 %671
    %v673 = vsel %vm396, %v664, 0.0
    %674 = vadd.xlane.f32.xlu0 %v673
    %v675 = vpop.xlane.xlu0 %674
    %v676 = vsel %vm396, %v666, 0.0
    %677 = vadd.xlane.f32.xlu0 %v676
    %v678 = vpop.xlane.xlu0 %677
    %v679 = vrcp.pop %v669
    %v680 = vrcp.pop %v672
    %v681 = vrcp.pop %v675
    %v682 = vrcp.pop %v678
    %v683 = vmul.f32 %v660, %v679
    %v684 = vmul.f32 %v662, %v680
    %v685 = vmul.f32 %v664, %v681
    %v686 = vmul.f32 %v666, %v682
    %v687 = vpack.c.bf16 %v684, %v683
    %v688 = vpack.c.bf16 %v686, %v685
    %690 = vrot.lane.b32.xlu0 %v299, 96
    %v691 = vpop.permute.xlu0 %690
    %v694 = vsel %vm396, %v687, 0
    %696 = vmatprep.subr.bf16.mxu0 0
    %697 = vmatpush1.bf16.msra.mxu0 0
    %698 = vmatprep.subr.bf16.mxu0 0
    %699 = vmatpush1.bf16.msra.mxu0 0
    %700 = vmatprep.subr.bf16.mxu0 0
    %701 = vmatpush1.bf16.msra.mxu0 0
    %702 = vmatprep.subr.bf16.mxu0 0
    %703 = vmatpush1.bf16.msra.mxu0 0
    %704 = vmatprep.subr.bf16.mxu0 0
    %705 = vmatpush1.bf16.msra.mxu0 0
    %706 = vmatprep.subr.bf16.mxu0 0
    %707 = vmatpush1.bf16.msra.mxu0 0
    %708 = vmatprep.subr.bf16.mxu0 0
    %709 = vmatpush1.bf16.msra.mxu0 0
    %710 = vmatprep.subr.bf16.mxu0 0
    %711 = vmatpush1.bf16.msra.mxu0 %v691
    %712 = vmatprep.subr.bf16.mxu0 0
    %713 = vmatpush2.bf16.msra.mxu0 0
    %714 = vmatprep.subr.bf16.mxu0 0
    %715 = vmatpush2.bf16.msra.mxu0 0
    %716 = vmatprep.subr.bf16.mxu0 0
    %717 = vmatpush2.bf16.msra.mxu0 0
    %718 = vmatprep.subr.bf16.mxu0 0
    %719 = vmatpush2.bf16.msra.mxu0 0
    %720 = vmatprep.subr.bf16.mxu0 0
    %721 = vmatpush2.bf16.msra.mxu0 0
    %722 = vmatprep.subr.bf16.mxu0 0
    %723 = vmatpush2.bf16.msra.mxu0 0
    %724 = vmatprep.subr.bf16.mxu0 0
    %725 = vmatpush2.bf16.msra.mxu0 0
    %726 = vmatprep.subr.bf16.mxu0 0
    %727 = vmatpush2.bf16.msra.mxu0 0
    %728 = vmatprep.mubr.bf16.mxu0 0
    %729 = vmatmul.mubr.bf16.gmra.mxu0 %v694
    %v730 = vpop.f32.mrf.mxu0
    %v731 = vadd.f32 0.0, %v730
    %v732 = vpop.f32.mrf.mxu0
    %v733 = vpop.f32.mrf.mxu0
    %v734 = vadd.f32 0.0, %v733
    %v735 = vpop.f32.mrf.mxu0
    %736 = vdwg.mxu0
    %738 = vrot.lane.b32.xlu0 %v300, 96
    %v739 = vpop.permute.xlu0 %738
    %v742 = vsel %vm396, %v688, 0
    %744 = vmatprep.subr.bf16.mxu0 0
    %745 = vmatpush1.bf16.msra.mxu0 0
    %746 = vmatprep.subr.bf16.mxu0 0
    %747 = vmatpush1.bf16.msra.mxu0 0
    %748 = vmatprep.subr.bf16.mxu0 0
    %749 = vmatpush1.bf16.msra.mxu0 0
    %750 = vmatprep.subr.bf16.mxu0 0
    %751 = vmatpush1.bf16.msra.mxu0 0
    %752 = vmatprep.subr.bf16.mxu0 0
    %753 = vmatpush1.bf16.msra.mxu0 0
    %754 = vmatprep.subr.bf16.mxu0 0
    %755 = vmatpush1.bf16.msra.mxu0 0
    %756 = vmatprep.subr.bf16.mxu0 0
    %757 = vmatpush1.bf16.msra.mxu0 0
    %758 = vmatprep.subr.bf16.mxu0 0
    %759 = vmatpush1.bf16.msra.mxu0 %v739
    %760 = vmatprep.subr.bf16.mxu0 0
    %761 = vmatpush2.bf16.msra.mxu0 0
    %762 = vmatprep.subr.bf16.mxu0 0
    %763 = vmatpush2.bf16.msra.mxu0 0
    %764 = vmatprep.subr.bf16.mxu0 0
    %765 = vmatpush2.bf16.msra.mxu0 0
    %766 = vmatprep.subr.bf16.mxu0 0
    %767 = vmatpush2.bf16.msra.mxu0 0
    %768 = vmatprep.subr.bf16.mxu0 0
    %769 = vmatpush2.bf16.msra.mxu0 0
    %770 = vmatprep.subr.bf16.mxu0 0
    %771 = vmatpush2.bf16.msra.mxu0 0
    %772 = vmatprep.subr.bf16.mxu0 0
    %773 = vmatpush2.bf16.msra.mxu0 0
    %774 = vmatprep.subr.bf16.mxu0 0
    %775 = vmatpush2.bf16.msra.mxu0 0
    %776 = vmatprep.mubr.bf16.mxu0 0
    %777 = vmatmul.mubr.bf16.gmra.mxu0 %v742
    %v778 = vpop.f32.mrf.mxu0
    %v779 = vadd.f32 0.0, %v778
    %v780 = vpop.f32.mrf.mxu0
    %v781 = vpop.f32.mrf.mxu0
    %v782 = vadd.f32 0.0, %v781
    %v783 = vpop.f32.mrf.mxu0
    %784 = vdwg.mxu0
    %v785 = vpack.c.bf16 %v734, %v731
    %v786 = vpack.c.bf16 %v782, %v779
    %s787 = scalar_lea.vmem [#allocation7], 16
    %v788 = vld [vmem:[%s787] sm:$0xf]
    %v789 = vld [vmem:[%s787 + $0x4] sm:$0xf]
    %v790 = vld [vmem:[%s787 + $0x8] sm:$0xf]
    %v791 = vld [vmem:[%s787 + $0xc] sm:$0xf]
    %v796 = vunpack.c.l.b16 %v788
    %v797 = vunpack.c.l.b16 %v789
    %v798 = vunpack.c.l.b16 %v790
    %v799 = vunpack.c.l.b16 %v791
    %v800 = vpack.c.b16 %v797, %v796
    %v801 = vpack.c.b16 %v799, %v798
    %v805 = vsel %vm301, %v785, 0
    %v808 = vsel %vm301, %v786, 0
    %810 = vmatprep.subr.bf16.mxu0 0
    %811 = vmatpush1.bf16.msra.mxu0 0
    %812 = vmatprep.subr.bf16.mxu0 0
    %813 = vmatpush1.bf16.msra.mxu0 0
    %814 = vmatprep.subr.bf16.mxu0 0
    %815 = vmatpush1.bf16.msra.mxu0 0
    %816 = vmatprep.subr.bf16.mxu0 0
    %817 = vmatpush1.bf16.msra.mxu0 0
    %818 = vmatprep.subr.bf16.mxu0 0
    %819 = vmatpush1.bf16.msra.mxu0 0
    %820 = vmatprep.subr.bf16.mxu0 0
    %821 = vmatpush1.bf16.msra.mxu0 0
    %822 = vmatprep.subr.bf16.mxu0 0
    %823 = vmatpush1.bf16.msra.mxu0 %v801
    %824 = vmatprep.subr.bf16.mxu0 0
    %825 = vmatpush1.bf16.msra.mxu0 %v800
    %826 = vmatprep.subr.bf16.mxu0 0
    %827 = vmatpush2.bf16.msra.mxu0 0
    %828 = vmatprep.subr.bf16.mxu0 0
    %829 = vmatpush2.bf16.msra.mxu0 0
    %830 = vmatprep.subr.bf16.mxu0 0
    %831 = vmatpush2.bf16.msra.mxu0 0
    %832 = vmatprep.subr.bf16.mxu0 0
    %833 = vmatpush2.bf16.msra.mxu0 0
    %834 = vmatprep.subr.bf16.mxu0 0
    %835 = vmatpush2.bf16.msra.mxu0 0
    %836 = vmatprep.subr.bf16.mxu0 0
    %837 = vmatpush2.bf16.msra.mxu0 0
    %838 = vmatprep.subr.bf16.mxu0 0
    %839 = vmatpush2.bf16.msra.mxu0 0
    %840 = vmatprep.subr.bf16.mxu0 0
    %841 = vmatpush2.bf16.msra.mxu0 0
    %842 = vmatprep.mubr.bf16.mxu0 0
    %843 = vmatmul.mubr.bf16.gmra.mxu0 %v805
    %v844 = vpop.f32.mrf.mxu0
    %v845 = vadd.f32 0.0, %v844
    %v846 = vpop.f32.mrf.mxu0
    %v847 = vpop.f32.mrf.mxu0
    %v848 = vadd.f32 0.0, %v847
    %v849 = vpop.f32.mrf.mxu0
    %850 = vmatprep.mubr.bf16.mxu0 0
    %851 = vmatmul.mubr.bf16.gmra.mxu0 %v808
    %v852 = vpop.f32.mrf.mxu0
    %v853 = vadd.f32 0.0, %v852
    %v854 = vpop.f32.mrf.mxu0
    %v855 = vpop.f32.mrf.mxu0
    %v856 = vadd.f32 0.0, %v855
    %v857 = vpop.f32.mrf.mxu0
    %858 = vdwg.mxu0
    %v863 = vunpack.c.l.b16 %v533
    %v864 = vunpack.c.l.b16 %v534
    %v865 = vunpack.c.l.b16 %v535
    %v866 = vunpack.c.l.b16 %v536
    %v867 = vpack.c.b16 %v864, %v863
    %v868 = vpack.c.b16 %v866, %v865
    %v872 = vsel %vm301, %v531, 0
    %v875 = vsel %vm301, %v532, 0
    %877 = vmatprep.subr.bf16.mxu0 0
    %878 = vmatpush1.bf16.msra.mxu0 0
    %879 = vmatprep.subr.bf16.mxu0 0
    %880 = vmatpush1.bf16.msra.mxu0 0
    %881 = vmatprep.subr.bf16.mxu0 0
    %882 = vmatpush1.bf16.msra.mxu0 0
    %883 = vmatprep.subr.bf16.mxu0 0
    %884 = vmatpush1.bf16.msra.mxu0 0
    %885 = vmatprep.subr.bf16.mxu0 0
    %886 = vmatpush1.bf16.msra.mxu0 0
    %887 = vmatprep.subr.bf16.mxu0 0
    %888 = vmatpush1.bf16.msra.mxu0 0
    %889 = vmatprep.subr.bf16.mxu0 0
    %890 = vmatpush1.bf16.msra.mxu0 %v868
    %891 = vmatprep.subr.bf16.mxu0 0
    %892 = vmatpush1.bf16.msra.mxu0 %v867
    %893 = vmatprep.subr.bf16.mxu0 0
    %894 = vmatpush2.bf16.msra.mxu0 0
    %895 = vmatprep.subr.bf16.mxu0 0
    %896 = vmatpush2.bf16.msra.mxu0 0
    %897 = vmatprep.subr.bf16.mxu0 0
    %898 = vmatpush2.bf16.msra.mxu0 0
    %899 = vmatprep.subr.bf16.mxu0 0
    %900 = vmatpush2.bf16.msra.mxu0 0
    %901 = vmatprep.subr.bf16.mxu0 0
    %902 = vmatpush2.bf16.msra.mxu0 0
    %903 = vmatprep.subr.bf16.mxu0 0
    %904 = vmatpush2.bf16.msra.mxu0 0
    %905 = vmatprep.subr.bf16.mxu0 0
    %906 = vmatpush2.bf16.msra.mxu0 0
    %907 = vmatprep.subr.bf16.mxu0 0
    %908 = vmatpush2.bf16.msra.mxu0 0
    %909 = vmatprep.mubr.bf16.mxu0 0
    %910 = vmatmul.mubr.bf16.gmra.mxu0 %v872
    %v911 = vpop.f32.mrf.mxu0
    %v912 = vadd.f32 %v845, %v911
    %v913 = vpop.f32.mrf.mxu0
    %v914 = vpop.f32.mrf.mxu0
    %v915 = vadd.f32 %v848, %v914
    %v916 = vpop.f32.mrf.mxu0
    %917 = vmatprep.mubr.bf16.mxu0 0
    %918 = vmatmul.mubr.bf16.gmra.mxu0 %v875
    %v919 = vpop.f32.mrf.mxu0
    %v920 = vadd.f32 %v853, %v919
    %v921 = vpop.f32.mrf.mxu0
    %v922 = vpop.f32.mrf.mxu0
    %v923 = vadd.f32 %v856, %v922
    %v924 = vpop.f32.mrf.mxu0
    %925 = vdwg.mxu0
    %926 = vrot.lane.b32.xlu0 %v295, 64
    %v927 = vpop.permute.xlu0 %926
    %928 = vrot.lane.b32.xlu0 %v297, 64
    %v929 = vpop.permute.xlu0 %928
    %v931 = vsel %vm301, %v927, 0
    %v934 = vsel %vm301, %v929, 0
    %936 = vmatprep.subr.bf16.mxu0 0
    %937 = vmatpush1.bf16.xpose.msra.mxu0 0
    %938 = vmatprep.subr.bf16.mxu0 0
    %939 = vmatpush1.bf16.xpose.msra.mxu0 0
    %940 = vmatprep.subr.bf16.mxu0 0
    %941 = vmatpush1.bf16.xpose.msra.mxu0 0
    %942 = vmatprep.subr.bf16.mxu0 0
    %943 = vmatpush1.bf16.xpose.msra.mxu0 0
    %944 = vmatprep.subr.bf16.mxu0 0
    %945 = vmatpush1.bf16.xpose.msra.mxu0 0
    %946 = vmatprep.subr.bf16.mxu0 0
    %947 = vmatpush1.bf16.xpose.msra.mxu0 0
    %948 = vmatprep.subr.bf16.mxu0 0
    %949 = vmatpush1.bf16.xpose.msra.mxu0 0
    %950 = vmatprep.subr.bf16.mxu0 0
    %951 = vmatpush1.bf16.xpose.msra.mxu0 %v934
    %952 = vmatprep.subr.bf16.mxu0 0
    %953 = vmatpush2.bf16.xpose.msra.mxu0 0
    %954 = vmatprep.subr.bf16.mxu0 0
    %955 = vmatpush2.bf16.xpose.msra.mxu0 0
    %956 = vmatprep.subr.bf16.mxu0 0
    %957 = vmatpush2.bf16.xpose.msra.mxu0 0
    %958 = vmatprep.subr.bf16.mxu0 0
    %959 = vmatpush2.bf16.xpose.msra.mxu0 0
    %960 = vmatprep.subr.bf16.mxu0 0
    %961 = vmatpush2.bf16.xpose.msra.mxu0 0
    %962 = vmatprep.subr.bf16.mxu0 0
    %963 = vmatpush2.bf16.xpose.msra.mxu0 0
    %964 = vmatprep.subr.bf16.mxu0 0
    %965 = vmatpush2.bf16.xpose.msra.mxu0 0
    %966 = vmatprep.subr.bf16.mxu0 0
    %967 = vmatpush2.bf16.xpose.msra.mxu0 0
    %968 = vmatprep.mubr.bf16.mxu0 0
    %969 = vmatmul.mubr.bf16.gmra.mxu0 %v931
    %v970 = vpop.f32.mrf.mxu0
    %v971 = vadd.f32 0.0, %v970
    %v972 = vpop.f32.mrf.mxu0
    %v973 = vpop.f32.mrf.mxu0
    %v974 = vadd.f32 0.0, %v973
    %v975 = vpop.f32.mrf.mxu0
    %976 = vdwg.mxu0
    %977 = vrot.lane.b32.xlu0 %v296, 64
    %v978 = vpop.permute.xlu0 %977
    %979 = vrot.lane.b32.xlu0 %v298, 64
    %v980 = vpop.permute.xlu0 %979
    %v982 = vsel %vm301, %v978, 0
    %v985 = vsel %vm301, %v980, 0
    %987 = vmatprep.subr.bf16.mxu0 0
    %988 = vmatpush1.bf16.xpose.msra.mxu0 0
    %989 = vmatprep.subr.bf16.mxu0 0
    %990 = vmatpush1.bf16.xpose.msra.mxu0 0
    %991 = vmatprep.subr.bf16.mxu0 0
    %992 = vmatpush1.bf16.xpose.msra.mxu0 0
    %993 = vmatprep.subr.bf16.mxu0 0
    %994 = vmatpush1.bf16.xpose.msra.mxu0 0
    %995 = vmatprep.subr.bf16.mxu0 0
    %996 = vmatpush1.bf16.xpose.msra.mxu0 0
    %997 = vmatprep.subr.bf16.mxu0 0
    %998 = vmatpush1.bf16.xpose.msra.mxu0 0
    %999 = vmatprep.subr.bf16.mxu0 0
    %1000 = vmatpush1.bf16.xpose.msra.mxu0 0
    %1001 = vmatprep.subr.bf16.mxu0 0
    %1002 = vmatpush1.bf16.xpose.msra.mxu0 %v985
    %1003 = vmatprep.subr.bf16.mxu0 0
    %1004 = vmatpush2.bf16.xpose.msra.mxu0 0
    %1005 = vmatprep.subr.bf16.mxu0 0
    %1006 = vmatpush2.bf16.xpose.msra.mxu0 0
    %1007 = vmatprep.subr.bf16.mxu0 0
    %1008 = vmatpush2.bf16.xpose.msra.mxu0 0
    %1009 = vmatprep.subr.bf16.mxu0 0
    %1010 = vmatpush2.bf16.xpose.msra.mxu0 0
    %1011 = vmatprep.subr.bf16.mxu0 0
    %1012 = vmatpush2.bf16.xpose.msra.mxu0 0
    %1013 = vmatprep.subr.bf16.mxu0 0
    %1014 = vmatpush2.bf16.xpose.msra.mxu0 0
    %1015 = vmatprep.subr.bf16.mxu0 0
    %1016 = vmatpush2.bf16.xpose.msra.mxu0 0
    %1017 = vmatprep.subr.bf16.mxu0 0
    %1018 = vmatpush2.bf16.xpose.msra.mxu0 0
    %1019 = vmatprep.mubr.bf16.mxu0 0
    %1020 = vmatmul.mubr.bf16.gmra.mxu0 %v982
    %v1021 = vpop.f32.mrf.mxu0
    %v1022 = vadd.f32 0.0, %v1021
    %v1023 = vpop.f32.mrf.mxu0
    %v1024 = vpop.f32.mrf.mxu0
    %v1025 = vadd.f32 0.0, %v1024
    %v1026 = vpop.f32.mrf.mxu0
    %1027 = vdwg.mxu0
    %v1028 = vsel %vm396, %v971, -inf
    %1029 = vmax.xlane.f32.xlu0 %v1028
    %v1030 = vpop.xlane.xlu0 %1029
    %v1031 = vsel %vm396, %v974, -inf
    %1032 = vmax.xlane.f32.xlu0 %v1031
    %v1033 = vpop.xlane.xlu0 %1032
    %v1034 = vsel %vm396, %v1022, -inf
    %1035 = vmax.xlane.f32.xlu0 %v1034
    %v1036 = vpop.xlane.xlu0 %1035
    %v1037 = vsel %vm396, %v1025, -inf
    %1038 = vmax.xlane.f32.xlu0 %v1037
    %v1039 = vpop.xlane.xlu0 %1038
    %v1040 = vsub.f32 %v971, %v1030
    %v1041 = vsub.f32 %v974, %v1033
    %v1042 = vsub.f32 %v1022, %v1036
    %v1043 = vsub.f32 %v1025, %v1039
    %v1044 = vmul.f32 %v1040, 1.442695
    %v1045 = vpow.pop %v1044
    %v1046 = vmul.f32 %v1041, 1.442695
    %v1047 = vpow.pop %v1046
    %v1048 = vmul.f32 %v1042, 1.442695
    %v1049 = vpow.pop %v1048
    %v1050 = vmul.f32 %v1043, 1.442695
    %v1051 = vpow.pop %v1050
    %v1052 = vsel %vm396, %v1045, 0.0
    %1053 = vadd.xlane.f32.xlu0 %v1052
    %v1054 = vpop.xlane.xlu0 %1053
    %v1055 = vsel %vm396, %v1047, 0.0
    %1056 = vadd.xlane.f32.xlu0 %v1055
    %v1057 = vpop.xlane.xlu0 %1056
    %v1058 = vsel %vm396, %v1049, 0.0
    %1059 = vadd.xlane.f32.xlu0 %v1058
    %v1060 = vpop.xlane.xlu0 %1059
    %v1061 = vsel %vm396, %v1051, 0.0
    %1062 = vadd.xlane.f32.xlu0 %v1061
    %v1063 = vpop.xlane.xlu0 %1062
    %v1064 = vrcp.pop %v1054
    %v1065 = vrcp.pop %v1057
    %v1066 = vrcp.pop %v1060
    %v1067 = vrcp.pop %v1063
    %v1068 = vmul.f32 %v1045, %v1064
    %v1069 = vmul.f32 %v1047, %v1065
    %v1070 = vmul.f32 %v1049, %v1066
    %v1071 = vmul.f32 %v1051, %v1067
    %v1072 = vpack.c.bf16 %v1069, %v1068
    %v1073 = vpack.c.bf16 %v1071, %v1070
    %1074 = vrot.lane.b32.xlu0 %v299, 64
    %v1075 = vpop.permute.xlu0 %1074
    %v1078 = vsel %vm396, %v1072, 0
    %1080 = vmatprep.subr.bf16.mxu0 0
    %1081 = vmatpush1.bf16.msra.mxu0 0
    %1082 = vmatprep.subr.bf16.mxu0 0
    %1083 = vmatpush1.bf16.msra.mxu0 0
    %1084 = vmatprep.subr.bf16.mxu0 0
    %1085 = vmatpush1.bf16.msra.mxu0 0
    %1086 = vmatprep.subr.bf16.mxu0 0
    %1087 = vmatpush1.bf16.msra.mxu0 0
    %1088 = vmatprep.subr.bf16.mxu0 0
    %1089 = vmatpush1.bf16.msra.mxu0 0
    %1090 = vmatprep.subr.bf16.mxu0 0
    %1091 = vmatpush1.bf16.msra.mxu0 0
    %1092 = vmatprep.subr.bf16.mxu0 0
    %1093 = vmatpush1.bf16.msra.mxu0 0
    %1094 = vmatprep.subr.bf16.mxu0 0
    %1095 = vmatpush1.bf16.msra.mxu0 %v1075
    %1096 = vmatprep.subr.bf16.mxu0 0
    %1097 = vmatpush2.bf16.msra.mxu0 0
    %1098 = vmatprep.subr.bf16.mxu0 0
    %1099 = vmatpush2.bf16.msra.mxu0 0
    %1100 = vmatprep.subr.bf16.mxu0 0
    %1101 = vmatpush2.bf16.msra.mxu0 0
    %1102 = vmatprep.subr.bf16.mxu0 0
    %1103 = vmatpush2.bf16.msra.mxu0 0
    %1104 = vmatprep.subr.bf16.mxu0 0
    %1105 = vmatpush2.bf16.msra.mxu0 0
    %1106 = vmatprep.subr.bf16.mxu0 0
    %1107 = vmatpush2.bf16.msra.mxu0 0
    %1108 = vmatprep.subr.bf16.mxu0 0
    %1109 = vmatpush2.bf16.msra.mxu0 0
    %1110 = vmatprep.subr.bf16.mxu0 0
    %1111 = vmatpush2.bf16.msra.mxu0 0
    %1112 = vmatprep.mubr.bf16.mxu0 0
    %1113 = vmatmul.mubr.bf16.gmra.mxu0 %v1078
    %v1114 = vpop.f32.mrf.mxu0
    %v1115 = vadd.f32 0.0, %v1114
    %v1116 = vpop.f32.mrf.mxu0
    %v1117 = vpop.f32.mrf.mxu0
    %v1118 = vadd.f32 0.0, %v1117
    %v1119 = vpop.f32.mrf.mxu0
    %1120 = vdwg.mxu0
    %1121 = vrot.lane.b32.xlu0 %v300, 64
    %v1122 = vpop.permute.xlu0 %1121
    %v1125 = vsel %vm396, %v1073, 0
    %1127 = vmatprep.subr.bf16.mxu0 0
    %1128 = vmatpush1.bf16.msra.mxu0 0
    %1129 = vmatprep.subr.bf16.mxu0 0
    %1130 = vmatpush1.bf16.msra.mxu0 0
    %1131 = vmatprep.subr.bf16.mxu0 0
    %1132 = vmatpush1.bf16.msra.mxu0 0
    %1133 = vmatprep.subr.bf16.mxu0 0
    %1134 = vmatpush1.bf16.msra.mxu0 0
    %1135 = vmatprep.subr.bf16.mxu0 0
    %1136 = vmatpush1.bf16.msra.mxu0 0
    %1137 = vmatprep.subr.bf16.mxu0 0
    %1138 = vmatpush1.bf16.msra.mxu0 0
    %1139 = vmatprep.subr.bf16.mxu0 0
    %1140 = vmatpush1.bf16.msra.mxu0 0
    %1141 = vmatprep.subr.bf16.mxu0 0
    %1142 = vmatpush1.bf16.msra.mxu0 %v1122
    %1143 = vmatprep.subr.bf16.mxu0 0
    %1144 = vmatpush2.bf16.msra.mxu0 0
    %1145 = vmatprep.subr.bf16.mxu0 0
    %1146 = vmatpush2.bf16.msra.mxu0 0
    %1147 = vmatprep.subr.bf16.mxu0 0
    %1148 = vmatpush2.bf16.msra.mxu0 0
    %1149 = vmatprep.subr.bf16.mxu0 0
    %1150 = vmatpush2.bf16.msra.mxu0 0
    %1151 = vmatprep.subr.bf16.mxu0 0
    %1152 = vmatpush2.bf16.msra.mxu0 0
    %1153 = vmatprep.subr.bf16.mxu0 0
    %1154 = vmatpush2.bf16.msra.mxu0 0
    %1155 = vmatprep.subr.bf16.mxu0 0
    %1156 = vmatpush2.bf16.msra.mxu0 0
    %1157 = vmatprep.subr.bf16.mxu0 0
    %1158 = vmatpush2.bf16.msra.mxu0 0
    %1159 = vmatprep.mubr.bf16.mxu0 0
    %1160 = vmatmul.mubr.bf16.gmra.mxu0 %v1125
    %v1161 = vpop.f32.mrf.mxu0
    %v1162 = vadd.f32 0.0, %v1161
    %v1163 = vpop.f32.mrf.mxu0
    %v1164 = vpop.f32.mrf.mxu0
    %v1165 = vadd.f32 0.0, %v1164
    %v1166 = vpop.f32.mrf.mxu0
    %1167 = vdwg.mxu0
    %v1168 = vpack.c.bf16 %v1118, %v1115
    %v1169 = vpack.c.bf16 %v1165, %v1162
    %s1170 = scalar_lea.vmem [#allocation7], 32
    %v1171 = vld [vmem:[%s1170] sm:$0xf]
    %v1172 = vld [vmem:[%s1170 + $0x4] sm:$0xf]
    %v1173 = vld [vmem:[%s1170 + $0x8] sm:$0xf]
    %v1174 = vld [vmem:[%s1170 + $0xc] sm:$0xf]
    %v1179 = vunpack.c.l.b16 %v1171
    %v1180 = vunpack.c.l.b16 %v1172
    %v1181 = vunpack.c.l.b16 %v1173
    %v1182 = vunpack.c.l.b16 %v1174
    %v1183 = vpack.c.b16 %v1180, %v1179
    %v1184 = vpack.c.b16 %v1182, %v1181
    %v1188 = vsel %vm301, %v1168, 0
    %v1191 = vsel %vm301, %v1169, 0
    %1193 = vmatprep.subr.bf16.mxu0 0
    %1194 = vmatpush1.bf16.msra.mxu0 0
    %1195 = vmatprep.subr.bf16.mxu0 0
    %1196 = vmatpush1.bf16.msra.mxu0 0
    %1197 = vmatprep.subr.bf16.mxu0 0
    %1198 = vmatpush1.bf16.msra.mxu0 0
    %1199 = vmatprep.subr.bf16.mxu0 0
    %1200 = vmatpush1.bf16.msra.mxu0 0
    %1201 = vmatprep.subr.bf16.mxu0 0
    %1202 = vmatpush1.bf16.msra.mxu0 0
    %1203 = vmatprep.subr.bf16.mxu0 0
    %1204 = vmatpush1.bf16.msra.mxu0 0
    %1205 = vmatprep.subr.bf16.mxu0 0
    %1206 = vmatpush1.bf16.msra.mxu0 %v1184
    %1207 = vmatprep.subr.bf16.mxu0 0
    %1208 = vmatpush1.bf16.msra.mxu0 %v1183
    %1209 = vmatprep.subr.bf16.mxu0 0
    %1210 = vmatpush2.bf16.msra.mxu0 0
    %1211 = vmatprep.subr.bf16.mxu0 0
    %1212 = vmatpush2.bf16.msra.mxu0 0
    %1213 = vmatprep.subr.bf16.mxu0 0
    %1214 = vmatpush2.bf16.msra.mxu0 0
    %1215 = vmatprep.subr.bf16.mxu0 0
    %1216 = vmatpush2.bf16.msra.mxu0 0
    %1217 = vmatprep.subr.bf16.mxu0 0
    %1218 = vmatpush2.bf16.msra.mxu0 0
    %1219 = vmatprep.subr.bf16.mxu0 0
    %1220 = vmatpush2.bf16.msra.mxu0 0
    %1221 = vmatprep.subr.bf16.mxu0 0
    %1222 = vmatpush2.bf16.msra.mxu0 0
    %1223 = vmatprep.subr.bf16.mxu0 0
    %1224 = vmatpush2.bf16.msra.mxu0 0
    %1225 = vmatprep.mubr.bf16.mxu0 0
    %1226 = vmatmul.mubr.bf16.gmra.mxu0 %v1188
    %v1227 = vpop.f32.mrf.mxu0
    %v1228 = vadd.f32 0.0, %v1227
    %v1229 = vpop.f32.mrf.mxu0
    %v1230 = vpop.f32.mrf.mxu0
    %v1231 = vadd.f32 0.0, %v1230
    %v1232 = vpop.f32.mrf.mxu0
    %1233 = vmatprep.mubr.bf16.mxu0 0
    %1234 = vmatmul.mubr.bf16.gmra.mxu0 %v1191
    %v1235 = vpop.f32.mrf.mxu0
    %v1236 = vadd.f32 0.0, %v1235
    %v1237 = vpop.f32.mrf.mxu0
    %v1238 = vpop.f32.mrf.mxu0
    %v1239 = vadd.f32 0.0, %v1238
    %v1240 = vpop.f32.mrf.mxu0
    %1241 = vdwg.mxu0
    %v1242 = vadd.f32 %v912, %v1228
    %v1243 = vadd.f32 %v915, %v1231
    %v1244 = vadd.f32 %v920, %v1236
    %v1245 = vadd.f32 %v923, %v1239
    %v1246 = vld [vmem:[%s3] sm:$0x1]
    %v1248 = vlaneseq
    %v1249 = vshrl.u32 %v1248, 7
    %v1250 = vsub.s32 0, %v1249
    %v1251 = vrot.slane %v1246, %v1250
    %v1253 = vadd.f32 %v1242, %v1251
    %v1254 = vadd.f32 %v1243, %v1251
    %v1255 = vadd.f32 %v1244, %v1251
    %v1256 = vadd.f32 %v1245, %v1251
    %1257 = vst [vmem:[#allocation8] sm:$0xff] %v1253
    %1258 = vst [vmem:[#allocation8 + $0x8] sm:$0xff] %v1254
    %1259 = vst [vmem:[#allocation8 + $0x10] sm:$0xff] %v1255
    %1260 = vst [vmem:[#allocation8 + $0x18] sm:$0xff] %v1256
    // Predicated region
    $region30: #{tpu_custom_call.1} parent=1 // pred_check
      _
    $region31: #{tpu_custom_call.1} parent=1 // pred_check_branch
      %1262 = sbr.rel (0) target = $region33
    $region32: #{tpu_custom_call.1} parent=1 // pred_region
      %s1264 = ssub.s32 512, 512
      %1265 = vsyncadd [#allocation4], %s1264
      %s1266 = sshll.u32 [#allocation8], 4
      %s1267 = int_to_ptr.vmem [resolvable:$true] %s1266
      %1272 = dma.vmem_to_hbm [thread:$0]  %s1267, 512, %s4, [#allocation4], 128, 128, 8
    $region33: #{tpu_custom_call.1} parent=1 // pred_fallthru
      _
    // Predicated region
    $region34: #{tpu_custom_call.1} parent=1 // pred_check
      _
    $region35: #{tpu_custom_call.1} parent=1 // pred_check_branch
      %1274 = sbr.rel (0) target = $region37
    $region36: #{tpu_custom_call.1} parent=1 // pred_region
      %1275 = dma.done [#allocation4], 512
    $region37: #{tpu_custom_call.1} parent=1 // pred_fallthru
      _
    %1276 = vsyncpa [#allocation3], 1
    %1277 = vsyncpa [#allocation6], 1
    %1278 = vsyncpa [#allocation4], 1

</llo_original>
